<compile_context>
chip_gen: v6e
topology: v6e:2x2x1
jax: 0.10.0
libtpu: 0.0.40
codegen_flags: <defaults>
</compile_context>

<pallas_src>
import functools

import jax
import jax.numpy as jnp
from jax.experimental import pallas as pl
from jax.experimental.pallas import tpu as pltpu

# utils.N_EFP is an external constant in the original repo; fixed here.
N_EFP = 64
INTERM_SIZE = 32
LATENT_SIZE = 32

PACK = 4            # batch rows packed per 128-lane row (4 * 32 latent = 128)
DEFAULT_TM = 4096   # batch rows per grid step (multiple of 8*PACK)


def _round_up(a, b):
    return pl.cdiv(a, b) * b


# ---------------------------------------------------------------------------
# Kernel
# ---------------------------------------------------------------------------
def encoder_kernel(x_ref, w1_ref, b1_ref, w2_ref, b2_ref, out_ref):
    """Fused MLP encoder on PACKed rows: relu(relu(Xp @ W1bd + b1) @ W2bd + b2).

    x_ref  : [tm/PACK, PACK*N_EFP]   (PACK batch rows per lane row)
    w1_ref : [PACK*N_EFP, PACK*INTERM]   block-diagonal (kron(I4, W1^T)), bf16
    w2_ref : [PACK*INTERM, PACK*LATENT]  block-diagonal (kron(I4, W2^T)), bf16
    b1_ref : [1, PACK*INTERM]  f32 (tiled bias)
    b2_ref : [1, PACK*LATENT]  f32 (tiled bias)
    out_ref: [tm/PACK, PACK*LATENT]  f32 (lane-dense, 128 lanes)
    """
    x = x_ref[...].astype(jnp.bfloat16)
    h = jnp.dot(x, w1_ref[...], preferred_element_type=jnp.float32)
    h = jnp.maximum(h + b1_ref[...], 0.0)
    z = jnp.dot(h.astype(jnp.bfloat16), w2_ref[...],
                preferred_element_type=jnp.float32)
    out_ref[...] = jnp.maximum(z + b2_ref[...], 0.0).astype(out_ref.dtype)


# ---------------------------------------------------------------------------
# Parameter preparation (one-time; amortized over all forward calls)
# ---------------------------------------------------------------------------
def pack_params(w1_t, b1, w2_t, b2):
    """Expand [in,out] weights to block-diagonal bf16 and tile biases."""
    eye = jnp.eye(PACK, dtype=jnp.float32)
    w1_bd = jnp.kron(eye, w1_t).astype(jnp.bfloat16)      # [PACK*N_EFP, PACK*interm]
    w2_bd = jnp.kron(eye, w2_t).astype(jnp.bfloat16)      # [PACK*interm, PACK*latent]
    b1_w = jnp.tile(b1.reshape(1, -1), (1, PACK)).astype(jnp.float32)
    b2_w = jnp.tile(b2.reshape(1, -1), (1, PACK)).astype(jnp.float32)
    return w1_bd, b1_w, w2_bd, b2_w


# ---------------------------------------------------------------------------
# Forward wrapper
# ---------------------------------------------------------------------------
@functools.partial(jax.jit, static_argnames=("tm",))
def encoder_forward(x, w1_bd, b1_w, w2_bd, b2_w, *, tm=DEFAULT_TM):
    """x: [B, N_EFP] (f32 or bf16; pass bf16 for the bandwidth-optimal path)."""
    B, n_efp = x.shape
    packed_in = w1_bd.shape[0]          # PACK * n_efp
    packed_lat = w2_bd.shape[1]         # PACK * latent
    latent = packed_lat // PACK
    assert packed_in == PACK * n_efp

    # Tile selection: multiple of 8*PACK (sublane alignment of the packed
    # block), capped by the (rounded-up) batch so tiny batches stay tiny.
    tm_eff = min(tm, _round_up(B, 8 * PACK))
    tm_eff = _round_up(tm_eff, 8 * PACK)

    # Pad B so every tile is full-size (uniform DMA shapes, unmasked stores).
    B_pad = _round_up(B, tm_eff)
    if B_pad != B:
        x = jnp.pad(x, ((0, B_pad - B), (0, 0)))

    # Free, contiguous reshape: pack PACK batch rows per lane row.
    xp = x.reshape(B_pad // PACK, packed_in)
    rows = B_pad // PACK
    tmp_rows = tm_eff // PACK
    grid = (rows // tmp_rows,)

    flops = 2 * rows * (packed_in * w1_bd.shape[1] + w2_bd.shape[0] * packed_lat)
    bytes_accessed = (
        xp.size * jnp.dtype(xp.dtype).itemsize
        + rows * packed_lat * 4
        + w1_bd.size * 2 + w2_bd.size * 2
        + b1_w.size * 4 + b2_w.size * 4
    )

    out_packed = pl.pallas_call(
        encoder_kernel,
        out_shape=jax.ShapeDtypeStruct((rows, packed_lat), jnp.float32),
        grid_spec=pltpu.PrefetchScalarGridSpec(
            num_scalar_prefetch=0,
            grid=grid,
            in_specs=[
                pl.BlockSpec((tmp_rows, packed_in), lambda i: (i, 0)),  # x tile
                pl.BlockSpec(w1_bd.shape, lambda i: (0, 0)),            # W1 blockdiag (resident)
                pl.BlockSpec(b1_w.shape, lambda i: (0, 0)),             # b1
                pl.BlockSpec(w2_bd.shape, lambda i: (0, 0)),            # W2 blockdiag (resident)
                pl.BlockSpec(b2_w.shape, lambda i: (0, 0)),             # b2
            ],
            out_specs=pl.BlockSpec((tmp_rows, packed_lat), lambda i: (i, 0)),
        ),
        compiler_params=pltpu.CompilerParams(
            dimension_semantics=("parallel",),
        ),
        cost_estimate=pl.CostEstimate(
            flops=flops, transcendentals=0, bytes_accessed=bytes_accessed),
    )(xp, w1_bd, b1_w, w2_bd, b2_w)

    out = out_packed.reshape(B_pad, latent)     # free reshape
    if B_pad != B:
        out = out[:B]
    return out


# ---------------------------------------------------------------------------
# Init + pure-JAX reference (mirrors PyTorch forward with bf16 matmul operands)
# ---------------------------------------------------------------------------
def init_params(key, n_efp=N_EFP, interm=INTERM_SIZE, latent=LATENT_SIZE):
    """nn.Linear-style init, weights stored transposed to [in, out]."""
    k1, k2, k3, k4 = jax.random.split(key, 4)
    bound1 = 1.0 / jnp.sqrt(n_efp)
    bound2 = 1.0 / jnp.sqrt(interm)
    w1_t = jax.random.uniform(k1, (n_efp, interm), jnp.float32, -bound1, bound1)
    b1 = jax.random.uniform(k2, (1, interm), jnp.float32, -bound1, bound1)
    w2_t = jax.random.uniform(k3, (interm, latent), jnp.float32, -bound2, bound2)
    b2 = jax.random.uniform(k4, (1, latent), jnp.float32, -bound2, bound2)
    return w1_t, b1, w2_t, b2


def encoder_ref(x, w1_t, b1, w2_t, b2):
    """Reference with the same bf16-operand / f32-accumulate numerics."""
    h = jnp.dot(x.astype(jnp.bfloat16), w1_t.astype(jnp.bfloat16),
                preferred_element_type=jnp.float32) + b1
    h = jnp.maximum(h, 0.0)
    z = jnp.dot(h.astype(jnp.bfloat16), w2_t.astype(jnp.bfloat16),
                preferred_element_type=jnp.float32) + b2
    return jnp.maximum(z, 0.0)


if __name__ == "__main__":
    key = jax.random.PRNGKey(0)
    kx, kp = jax.random.split(key)

    w1_t, b1, w2_t, b2 = init_params(kp)
    w1_bd, b1_w, w2_bd, b2_w = pack_params(w1_t, b1, w2_t, b2)

    # Small demo batch (exercises the pad-to-tile path).  x passed as bf16 to
    # use the bandwidth-optimal input path; f32 x also works (cast in-kernel).
    B = 8
    x = jax.random.normal(kx, (B, N_EFP), dtype=jnp.float32).astype(jnp.bfloat16)

    latent = jax.block_until_ready(encoder_forward(x, w1_bd, b1_w, w2_bd, b2_w))
    ref = encoder_ref(x, w1_t, b1, w2_t, b2)
    assert latent.shape == (B, LATENT_SIZE)
    assert jnp.allclose(latent, ref, atol=2e-3, rtol=2e-3), "mismatch vs reference"

    # Multi-tile path (grid > 1, ragged batch -> padded) to validate tiling.
    B2 = 4101
    x2 = jax.random.normal(kx, (B2, N_EFP), dtype=jnp.float32).astype(jnp.bfloat16)
    lat2 = jax.block_until_ready(
        encoder_forward(x2, w1_bd, b1_w, w2_bd, b2_w, tm=2048))
    ref2 = encoder_ref(x2, w1_t, b1, w2_t, b2)
    assert lat2.shape == (B2, LATENT_SIZE)
    assert jnp.allclose(lat2, ref2, atol=2e-3, rtol=2e-3), "mismatch (tiled)"

    print("KERNEL_OK")
</pallas_src>

<mosaic_0001>
module attributes {stable_mosaic.version = 11 : i64} {
  func.func @encoder_kernel(%arg0: i32, %arg1: memref<8x256xbf16, #tpu.memory_space<vmem>>, %arg2: memref<256x128xbf16, #tpu.memory_space<vmem>>, %arg3: memref<1x128xf32, #tpu.memory_space<vmem>>, %arg4: memref<128x128xbf16, #tpu.memory_space<vmem>>, %arg5: memref<1x128xf32, #tpu.memory_space<vmem>>, %arg6: memref<8x128xf32, #tpu.memory_space<vmem>>) attributes {dimension_semantics = [#tpu.dimension_semantics<parallel>], iteration_bounds = array<i64: 1>, scalar_prefetch = 0 : i64, scratch_operands = 0 : i64, tpu.core_type = #tpu.core_type<tc>, window_params = [{transform_indices = @transform_0, window_bounds = array<i64: 8, 256>}, {pipeline_mode = #tpu.pipeline_mode<synchronous>, transform_indices = @transform_1, window_bounds = array<i64: 256, 128>}, {pipeline_mode = #tpu.pipeline_mode<synchronous>, transform_indices = @transform_2, window_bounds = array<i64: 1, 128>}, {pipeline_mode = #tpu.pipeline_mode<synchronous>, transform_indices = @transform_3, window_bounds = array<i64: 128, 128>}, {pipeline_mode = #tpu.pipeline_mode<synchronous>, transform_indices = @transform_4, window_bounds = array<i64: 1, 128>}, {transform_indices = @transform_5, window_bounds = array<i64: 8, 128>}]} {
    %c0 = arith.constant 0 : index
    %c0_0 = arith.constant 0 : index
    %0 = vector.load %arg1[%c0, %c0_0] : memref<8x256xbf16, #tpu.memory_space<vmem>>, vector<8x256xbf16>
    %c0_1 = arith.constant 0 : index
    %c0_2 = arith.constant 0 : index
    %1 = vector.load %arg2[%c0_1, %c0_2] : memref<256x128xbf16, #tpu.memory_space<vmem>>, vector<256x128xbf16>
    %cst = arith.constant dense<0.000000e+00> : vector<8x128xf32>
    %2 = tpu.matmul %0, %1, %cst {dimension_numbers = #tpu.dot_dimension_numbers<[1], [0], [0], [1], [0, 0, 1, 1], [], []>} : vector<8x256xbf16>, vector<256x128xbf16>, vector<8x128xf32> -> vector<8x128xf32>
    %c0_3 = arith.constant 0 : index
    %c0_4 = arith.constant 0 : index
    %3 = vector.load %arg3[%c0_3, %c0_4] : memref<1x128xf32, #tpu.memory_space<vmem>>, vector<1x128xf32>
    %4 = vector.broadcast %3 : vector<1x128xf32> to vector<8x128xf32>
    %5 = arith.addf %2, %4 : vector<8x128xf32>
    %cst_5 = arith.constant 0.000000e+00 : f32
    %6 = vector.broadcast %cst_5 : f32 to vector<8x128xf32>
    %7 = arith.maximumf %5, %6 : vector<8x128xf32>
    %8 = arith.truncf %7 : vector<8x128xf32> to vector<8x128xbf16>
    %c0_6 = arith.constant 0 : index
    %c0_7 = arith.constant 0 : index
    %9 = vector.load %arg4[%c0_6, %c0_7] : memref<128x128xbf16, #tpu.memory_space<vmem>>, vector<128x128xbf16>
    %cst_8 = arith.constant dense<0.000000e+00> : vector<8x128xf32>
    %10 = tpu.matmul %8, %9, %cst_8 {dimension_numbers = #tpu.dot_dimension_numbers<[1], [0], [0], [1], [0, 0, 1, 1], [], []>} : vector<8x128xbf16>, vector<128x128xbf16>, vector<8x128xf32> -> vector<8x128xf32>
    %c0_9 = arith.constant 0 : index
    %c0_10 = arith.constant 0 : index
    %11 = vector.load %arg5[%c0_9, %c0_10] : memref<1x128xf32, #tpu.memory_space<vmem>>, vector<1x128xf32>
    %12 = vector.broadcast %11 : vector<1x128xf32> to vector<8x128xf32>
    %13 = arith.addf %10, %12 : vector<8x128xf32>
    %cst_11 = arith.constant 0.000000e+00 : f32
    %14 = vector.broadcast %cst_11 : f32 to vector<8x128xf32>
    %15 = arith.maximumf %13, %14 : vector<8x128xf32>
    %c0_12 = arith.constant 0 : index
    %c0_13 = arith.constant 0 : index
    %16 = vector.load %arg6[%c0_12, %c0_13] : memref<8x128xf32, #tpu.memory_space<vmem>>, vector<8x128xf32>
    tpu.vector_store %arg6[%c0_12, %c0_13], %15 {strides = array<i32>} : memref<8x128xf32, #tpu.memory_space<vmem>>, vector<8x128xf32>,
    return
  }
  func.func @transform_0(%arg0: i32) -> (i32, i32) {
    %c0_i32 = arith.constant 0 : i32
    %c0_i32_0 = arith.constant 0 : i32
    return %arg0, %c0_i32 : i32, i32
  }
  func.func @transform_1(%arg0: i32) -> (i32, i32) {
    %c0_i32 = arith.constant 0 : i32
    %c0_i32_0 = arith.constant 0 : i32
    %c0_i32_1 = arith.constant 0 : i32
    return %c0_i32, %c0_i32_0 : i32, i32
  }
  func.func @transform_2(%arg0: i32) -> (i32, i32) {
    %c0_i32 = arith.constant 0 : i32
    %c0_i32_0 = arith.constant 0 : i32
    %c0_i32_1 = arith.constant 0 : i32
    return %c0_i32, %c0_i32_0 : i32, i32
  }
  func.func @transform_3(%arg0: i32) -> (i32, i32) {
    %c0_i32 = arith.constant 0 : i32
    %c0_i32_0 = arith.constant 0 : i32
    %c0_i32_1 = arith.constant 0 : i32
    return %c0_i32, %c0_i32_0 : i32, i32
  }
  func.func @transform_4(%arg0: i32) -> (i32, i32) {
    %c0_i32 = arith.constant 0 : i32
    %c0_i32_0 = arith.constant 0 : i32
    %c0_i32_1 = arith.constant 0 : i32
    return %c0_i32, %c0_i32_0 : i32, i32
  }
  func.func @transform_5(%arg0: i32) -> (i32, i32) {
    %c0_i32 = arith.constant 0 : i32
    %c0_i32_0 = arith.constant 0 : i32
    return %arg0, %c0_i32 : i32, i32
  }
}

</mosaic_0001>

<llo_original>
// kernel: encoder_forward.1
$region0: #{encoder_forward.1}
  #allocation0 [shape = 'u32[]', space=smem, size = 0x4, offset = 0x4, fixed_abs, tag = 'smem constant byte address 0x4 - core index']
  #allocation1 [shape = 'u32[144,128]{1,0:T(1,128)}', space=vmem, size = 0x12000, scoped, tag = 'internal scratch']
  %s0 = inlined_call_operand.vmem [shape: bf16[8,256], index: 0, kind: input, shape index: {}]
  %s1 = inlined_call_operand.hbm [shape: bf16[256,128], index: 1, kind: input, shape index: {}]
  %s2 = inlined_call_operand.vmem [shape: f32[1,128], index: 2, kind: input, shape index: {}]
  %s3 = inlined_call_operand.hbm [shape: bf16[128,128], index: 3, kind: input, shape index: {}]
  %s4 = inlined_call_operand.vmem [shape: f32[1,128], index: 4, kind: input, shape index: {}]
  %s5 = inlined_call_operand.vmem [shape: f32[8,128], index: 5, kind: output, shape index: {}]
  %s6 = sld [smem:[#allocation0]]
  $region38: #{encoder_forward.1} parent=0
    _
  %s8 = ssub.s32 1, %s6
  %s9 = scalar_select 0, %s8, %s6
  $region1: #{encoder_forward.1} parent=0
    #allocation2 [shape = 'u8[65536]{0}', space=vmem, size = 0x10000, scoped, tag = 'input window, operand 1, single buffered']
    #allocation3 [shape = 's32[1]{0}', space=sflag, size = 0x4, scoped, tag = 'scoped memory for encoder_forward.1']
    #allocation4 [shape = 'u8[32768]{0}', space=vmem, size = 0x8000, scoped, tag = 'input window, operand 3, single buffered']
    #allocation5 [shape = 's32[1]{0}', space=sflag, size = 0x4, scoped, tag = 'scoped memory for encoder_forward.1']
    %10 = vsyncpa [#allocation3], 0
    %11 = vsyncpa [#allocation5], 0
    // Predicated region
    $region2: #{encoder_forward.1} parent=1 // pred_check
      _
    $region3: #{encoder_forward.1} parent=1 // pred_check_branch
      %13 = sbr.rel (0) target = $region5
    $region4: #{encoder_forward.1} parent=1 // pred_region
      _
    $region5: #{encoder_forward.1} parent=1 // pred_fallthru
      _
    // Predicated region
    $region6: #{encoder_forward.1} parent=1 // pred_check
      _
    $region7: #{encoder_forward.1} parent=1 // pred_check_branch
      %15 = sbr.rel (0) target = $region9
    $region8: #{encoder_forward.1} parent=1 // pred_region
      %s17 = ssub.s32 2048, 2048
      %18 = vsyncadd [#allocation3], %s17
      %s19 = sshll.u32 [#allocation2], 4
      %s20 = int_to_ptr.vmem [resolvable:$true] %s19
      %25 = dma.hbm_to_vmem [thread:$0]  %s1, 2048, %s20, [#allocation3], 64, 64, 4
    $region9: #{encoder_forward.1} parent=1 // pred_fallthru
      _
    // Predicated region
    $region10: #{encoder_forward.1} parent=1 // pred_check
      _
    $region11: #{encoder_forward.1} parent=1 // pred_check_branch
      %27 = sbr.rel (0) target = $region13
    $region12: #{encoder_forward.1} parent=1 // pred_region
      _
    $region13: #{encoder_forward.1} parent=1 // pred_fallthru
      _
    // Predicated region
    $region14: #{encoder_forward.1} parent=1 // pred_check
      _
    $region15: #{encoder_forward.1} parent=1 // pred_check_branch
      %29 = sbr.rel (0) target = $region17
    $region16: #{encoder_forward.1} parent=1 // pred_region
      %s31 = ssub.s32 1024, 1024
      %32 = vsyncadd [#allocation5], %s31
      %s33 = sshll.u32 [#allocation4], 4
      %s34 = int_to_ptr.vmem [resolvable:$true] %s33
      %39 = dma.hbm_to_vmem [thread:$0]  %s3, 1024, %s34, [#allocation5], 64, 64, 4
    $region17: #{encoder_forward.1} parent=1 // pred_fallthru
      _
    // Predicated region
    $region18: #{encoder_forward.1} parent=1 // pred_check
      _
    $region19: #{encoder_forward.1} parent=1 // pred_check_branch
      %41 = sbr.rel (0) target = $region21
    $region20: #{encoder_forward.1} parent=1 // pred_region
      _
    $region21: #{encoder_forward.1} parent=1 // pred_fallthru
      _
    // Predicated region
    $region22: #{encoder_forward.1} parent=1 // pred_check
      _
    $region23: #{encoder_forward.1} parent=1 // pred_check_branch
      %43 = sbr.rel (0) target = $region25
    $region24: #{encoder_forward.1} parent=1 // pred_region
      %44 = dma.done [#allocation3], 2048
    $region25: #{encoder_forward.1} parent=1 // pred_fallthru
      _
    // Predicated region
    $region26: #{encoder_forward.1} parent=1 // pred_check
      _
    $region27: #{encoder_forward.1} parent=1 // pred_check_branch
      %46 = sbr.rel (0) target = $region29
    $region28: #{encoder_forward.1} parent=1 // pred_region
      %47 = dma.done [#allocation5], 1024
    $region29: #{encoder_forward.1} parent=1 // pred_fallthru
      _
    %v49 = vld [vmem:[%s0] sm:$0xff]
    %v50 = vld [vmem:[#allocation2] sm:$0xf]
    %v51 = vld [vmem:[#allocation2 + $0x4] sm:$0xf]
    %v52 = vld [vmem:[#allocation2 + $0x8] sm:$0xf]
    %v53 = vld [vmem:[#allocation2 + $0xc] sm:$0xf]
    %v54 = vld [vmem:[#allocation2 + $0x10] sm:$0xf]
    %v55 = vld [vmem:[#allocation2 + $0x14] sm:$0xf]
    %v56 = vld [vmem:[#allocation2 + $0x18] sm:$0xf]
    %v57 = vld [vmem:[#allocation2 + $0x1c] sm:$0xf]
    %v58 = vld [vmem:[#allocation2 + $0x20] sm:$0xf]
    %v59 = vld [vmem:[#allocation2 + $0x24] sm:$0xf]
    %v60 = vld [vmem:[#allocation2 + $0x28] sm:$0xf]
    %v61 = vld [vmem:[#allocation2 + $0x2c] sm:$0xf]
    %v62 = vld [vmem:[#allocation2 + $0x30] sm:$0xf]
    %v63 = vld [vmem:[#allocation2 + $0x34] sm:$0xf]
    %v64 = vld [vmem:[#allocation2 + $0x38] sm:$0xf]
    %v65 = vld [vmem:[#allocation2 + $0x3c] sm:$0xf]
    %v66 = vld [vmem:[#allocation2 + $0x40] sm:$0xf]
    %v67 = vld [vmem:[#allocation2 + $0x44] sm:$0xf]
    %v68 = vld [vmem:[#allocation2 + $0x48] sm:$0xf]
    %v69 = vld [vmem:[#allocation2 + $0x4c] sm:$0xf]
    %v70 = vld [vmem:[#allocation2 + $0x50] sm:$0xf]
    %v71 = vld [vmem:[#allocation2 + $0x54] sm:$0xf]
    %v72 = vld [vmem:[#allocation2 + $0x58] sm:$0xf]
    %v73 = vld [vmem:[#allocation2 + $0x5c] sm:$0xf]
    %v74 = vld [vmem:[#allocation2 + $0x60] sm:$0xf]
    %v75 = vld [vmem:[#allocation2 + $0x64] sm:$0xf]
    %v76 = vld [vmem:[#allocation2 + $0x68] sm:$0xf]
    %v77 = vld [vmem:[#allocation2 + $0x6c] sm:$0xf]
    %v78 = vld [vmem:[#allocation2 + $0x70] sm:$0xf]
    %v79 = vld [vmem:[#allocation2 + $0x74] sm:$0xf]
    %v80 = vld [vmem:[#allocation2 + $0x78] sm:$0xf]
    %v81 = vld [vmem:[#allocation2 + $0x7c] sm:$0xf]
    %v82 = vld [vmem:[%s2] sm:$0x1]
    %v84 = vlaneseq
    %v85 = vshrl.u32 %v84, 7
    %v86 = vsub.s32 0, %v85
    %v87 = vrot.slane %v82, %v86
    %v90 = vunpack.c.l.b16 %v49
    %v91 = vunpack.c.h.b16 %v49
    %v92 = vpack.c.b16 %v90, %v90
    %v93 = vpack.c.b16 %v91, %v91
    %v128 = vunpack.c.l.b16 %v50
    %v129 = vunpack.c.l.b16 %v51
    %v130 = vunpack.c.l.b16 %v52
    %v131 = vunpack.c.l.b16 %v53
    %v132 = vunpack.c.l.b16 %v54
    %v133 = vunpack.c.l.b16 %v55
    %v134 = vunpack.c.l.b16 %v56
    %v135 = vunpack.c.l.b16 %v57
    %v136 = vunpack.c.l.b16 %v58
    %v137 = vunpack.c.l.b16 %v59
    %v138 = vunpack.c.l.b16 %v60
    %v139 = vunpack.c.l.b16 %v61
    %v140 = vunpack.c.l.b16 %v62
    %v141 = vunpack.c.l.b16 %v63
    %v142 = vunpack.c.l.b16 %v64
    %v143 = vunpack.c.l.b16 %v65
    %v144 = vunpack.c.l.b16 %v66
    %v145 = vunpack.c.l.b16 %v67
    %v146 = vunpack.c.l.b16 %v68
    %v147 = vunpack.c.l.b16 %v69
    %v148 = vunpack.c.l.b16 %v70
    %v149 = vunpack.c.l.b16 %v71
    %v150 = vunpack.c.l.b16 %v72
    %v151 = vunpack.c.l.b16 %v73
    %v152 = vunpack.c.l.b16 %v74
    %v153 = vunpack.c.l.b16 %v75
    %v154 = vunpack.c.l.b16 %v76
    %v155 = vunpack.c.l.b16 %v77
    %v156 = vunpack.c.l.b16 %v78
    %v157 = vunpack.c.l.b16 %v79
    %v158 = vunpack.c.l.b16 %v80
    %v159 = vunpack.c.l.b16 %v81
    %v160 = vpack.c.b16 %v129, %v128
    %v161 = vpack.c.b16 %v131, %v130
    %v162 = vpack.c.b16 %v133, %v132
    %v163 = vpack.c.b16 %v135, %v134
    %v164 = vpack.c.b16 %v137, %v136
    %v165 = vpack.c.b16 %v139, %v138
    %v166 = vpack.c.b16 %v141, %v140
    %v167 = vpack.c.b16 %v143, %v142
    %v168 = vpack.c.b16 %v145, %v144
    %v169 = vpack.c.b16 %v147, %v146
    %v170 = vpack.c.b16 %v149, %v148
    %v171 = vpack.c.b16 %v151, %v150
    %v172 = vpack.c.b16 %v153, %v152
    %v173 = vpack.c.b16 %v155, %v154
    %v174 = vpack.c.b16 %v157, %v156
    %v175 = vpack.c.b16 %v159, %v158
    %192 = vmatprep.subr.bf16.mxu0 0
    %193 = vmatpush1.bf16.msra.mxu0 %v167
    %194 = vmatprep.subr.bf16.mxu0 0
    %195 = vmatpush1.bf16.msra.mxu0 %v166
    %196 = vmatprep.subr.bf16.mxu0 0
    %197 = vmatpush1.bf16.msra.mxu0 %v165
    %198 = vmatprep.subr.bf16.mxu0 0
    %199 = vmatpush1.bf16.msra.mxu0 %v164
    %200 = vmatprep.subr.bf16.mxu0 0
    %201 = vmatpush1.bf16.msra.mxu0 %v163
    %202 = vmatprep.subr.bf16.mxu0 0
    %203 = vmatpush1.bf16.msra.mxu0 %v162
    %204 = vmatprep.subr.bf16.mxu0 0
    %205 = vmatpush1.bf16.msra.mxu0 %v161
    %206 = vmatprep.subr.bf16.mxu0 0
    %207 = vmatpush1.bf16.msra.mxu0 %v160
    %208 = vmatprep.subr.bf16.mxu0 0
    %209 = vmatpush2.bf16.msra.mxu0 %v175
    %210 = vmatprep.subr.bf16.mxu0 0
    %211 = vmatpush2.bf16.msra.mxu0 %v174
    %212 = vmatprep.subr.bf16.mxu0 0
    %213 = vmatpush2.bf16.msra.mxu0 %v173
    %214 = vmatprep.subr.bf16.mxu0 0
    %215 = vmatpush2.bf16.msra.mxu0 %v172
    %216 = vmatprep.subr.bf16.mxu0 0
    %217 = vmatpush2.bf16.msra.mxu0 %v171
    %218 = vmatprep.subr.bf16.mxu0 0
    %219 = vmatpush2.bf16.msra.mxu0 %v170
    %220 = vmatprep.subr.bf16.mxu0 0
    %221 = vmatpush2.bf16.msra.mxu0 %v169
    %222 = vmatprep.subr.bf16.mxu0 0
    %223 = vmatpush2.bf16.msra.mxu0 %v168
    %224 = vmatprep.mubr.bf16.mxu0 %v93
    %225 = vmatmul.mubr.bf16.gmra.mxu0 %v92
    %v226 = vpop.f32.mrf.mxu0
    %v227 = vadd.f32 %v87, %v226
    %v228 = vpop.f32.mrf.mxu0
    %v229 = vpop.f32.mrf.mxu0
    %v230 = vpop.f32.mrf.mxu0
    %231 = vdwg.mxu0
    %v232 = vmax.f32 %v227, 0.0
    %v233 = vpack.c.bf16 %v232, %v232
    %v234 = vld [vmem:[#allocation4] sm:$0xf]
    %v235 = vld [vmem:[#allocation4 + $0x4] sm:$0xf]
    %v236 = vld [vmem:[#allocation4 + $0x8] sm:$0xf]
    %v237 = vld [vmem:[#allocation4 + $0xc] sm:$0xf]
    %v238 = vld [vmem:[#allocation4 + $0x10] sm:$0xf]
    %v239 = vld [vmem:[#allocation4 + $0x14] sm:$0xf]
    %v240 = vld [vmem:[#allocation4 + $0x18] sm:$0xf]
    %v241 = vld [vmem:[#allocation4 + $0x1c] sm:$0xf]
    %v242 = vld [vmem:[#allocation4 + $0x20] sm:$0xf]
    %v243 = vld [vmem:[#allocation4 + $0x24] sm:$0xf]
    %v244 = vld [vmem:[#allocation4 + $0x28] sm:$0xf]
    %v245 = vld [vmem:[#allocation4 + $0x2c] sm:$0xf]
    %v246 = vld [vmem:[#allocation4 + $0x30] sm:$0xf]
    %v247 = vld [vmem:[#allocation4 + $0x34] sm:$0xf]
    %v248 = vld [vmem:[#allocation4 + $0x38] sm:$0xf]
    %v249 = vld [vmem:[#allocation4 + $0x3c] sm:$0xf]
    %v250 = vld [vmem:[%s4] sm:$0x1]
    %v252 = vlaneseq
    %v253 = vshrl.u32 %v252, 7
    %v254 = vsub.s32 0, %v253
    %v255 = vrot.slane %v250, %v254
    %v273 = vunpack.c.l.b16 %v234
    %v274 = vunpack.c.l.b16 %v235
    %v275 = vunpack.c.l.b16 %v236
    %v276 = vunpack.c.l.b16 %v237
    %v277 = vunpack.c.l.b16 %v238
    %v278 = vunpack.c.l.b16 %v239
    %v279 = vunpack.c.l.b16 %v240
    %v280 = vunpack.c.l.b16 %v241
    %v281 = vunpack.c.l.b16 %v242
    %v282 = vunpack.c.l.b16 %v243
    %v283 = vunpack.c.l.b16 %v244
    %v284 = vunpack.c.l.b16 %v245
    %v285 = vunpack.c.l.b16 %v246
    %v286 = vunpack.c.l.b16 %v247
    %v287 = vunpack.c.l.b16 %v248
    %v288 = vunpack.c.l.b16 %v249
    %v289 = vpack.c.b16 %v274, %v273
    %v290 = vpack.c.b16 %v276, %v275
    %v291 = vpack.c.b16 %v278, %v277
    %v292 = vpack.c.b16 %v280, %v279
    %v293 = vpack.c.b16 %v282, %v281
    %v294 = vpack.c.b16 %v284, %v283
    %v295 = vpack.c.b16 %v286, %v285
    %v296 = vpack.c.b16 %v288, %v287
    %305 = vmatprep.subr.bf16.mxu0 0
    %306 = vmatpush1.bf16.msra.mxu0 %v296
    %307 = vmatprep.subr.bf16.mxu0 0
    %308 = vmatpush1.bf16.msra.mxu0 %v295
    %309 = vmatprep.subr.bf16.mxu0 0
    %310 = vmatpush1.bf16.msra.mxu0 %v294
    %311 = vmatprep.subr.bf16.mxu0 0
    %312 = vmatpush1.bf16.msra.mxu0 %v293
    %313 = vmatprep.subr.bf16.mxu0 0
    %314 = vmatpush1.bf16.msra.mxu0 %v292
    %315 = vmatprep.subr.bf16.mxu0 0
    %316 = vmatpush1.bf16.msra.mxu0 %v291
    %317 = vmatprep.subr.bf16.mxu0 0
    %318 = vmatpush1.bf16.msra.mxu0 %v290
    %319 = vmatprep.subr.bf16.mxu0 0
    %320 = vmatpush1.bf16.msra.mxu0 %v289
    %321 = vmatprep.subr.bf16.mxu0 0
    %322 = vmatpush2.bf16.msra.mxu0 0
    %323 = vmatprep.subr.bf16.mxu0 0
    %324 = vmatpush2.bf16.msra.mxu0 0
    %325 = vmatprep.subr.bf16.mxu0 0
    %326 = vmatpush2.bf16.msra.mxu0 0
    %327 = vmatprep.subr.bf16.mxu0 0
    %328 = vmatpush2.bf16.msra.mxu0 0
    %329 = vmatprep.subr.bf16.mxu0 0
    %330 = vmatpush2.bf16.msra.mxu0 0
    %331 = vmatprep.subr.bf16.mxu0 0
    %332 = vmatpush2.bf16.msra.mxu0 0
    %333 = vmatprep.subr.bf16.mxu0 0
    %334 = vmatpush2.bf16.msra.mxu0 0
    %335 = vmatprep.subr.bf16.mxu0 0
    %336 = vmatpush2.bf16.msra.mxu0 0
    %337 = vmatprep.mubr.bf16.mxu0 0
    %338 = vmatmul.mubr.bf16.gmra.mxu0 %v233
    %v339 = vpop.f32.mrf.mxu0
    %v340 = vadd.f32 %v255, %v339
    %v341 = vpop.f32.mrf.mxu0
    %v342 = vpop.f32.mrf.mxu0
    %v343 = vpop.f32.mrf.mxu0
    %344 = vdwg.mxu0
    %v345 = vmax.f32 %v340, 0.0
    %346 = vst [vmem:[%s5] sm:$0xff] %v345
    // Predicated region
    $region30: #{encoder_forward.1} parent=1 // pred_check
      _
    $region31: #{encoder_forward.1} parent=1 // pred_check_branch
      %348 = sbr.rel (0) target = $region33
    $region32: #{encoder_forward.1} parent=1 // pred_region
      _
    $region33: #{encoder_forward.1} parent=1 // pred_fallthru
      _
    // Predicated region
    $region34: #{encoder_forward.1} parent=1 // pred_check
      _
    $region35: #{encoder_forward.1} parent=1 // pred_check_branch
      %350 = sbr.rel (0) target = $region37
    $region36: #{encoder_forward.1} parent=1 // pred_region
      _
    $region37: #{encoder_forward.1} parent=1 // pred_fallthru
      _
    %351 = vsyncpa [#allocation3], 1
    %352 = vsyncpa [#allocation5], 1

</llo_original>
